<compile_context>
chip_gen: v7x
topology: tpu7x:2x2x1
jax: 0.10.0
libtpu: 0.0.40
codegen_flags: <defaults>
</compile_context>

<pallas_src>
import functools

import jax
import jax.numpy as jnp
from jax import lax
from jax.experimental import pallas as pl
from jax.experimental.pallas import tpu as pltpu


def _iln_stats_kernel(x_ref, rho_ref, gamma_ref, beta_ref, a_ref, b_ref,
                      sum_sc, sq_sc, *, eps, hw_total, c_total):
    """Pass 1: accumulate per-channel sum / sumsq over HW tiles; on the last
    tile collapse IN/LN stats + rho mix + gamma/beta into (A_c, B_c)."""
    t = pl.program_id(1)

    @pl.when(t == 0)
    def _init():
        sum_sc[...] = jnp.zeros_like(sum_sc)
        sq_sc[...] = jnp.zeros_like(sq_sc)

    x = x_ref[...].astype(jnp.float32)                       # (1, C, T)
    sum_sc[...] += jnp.sum(x, axis=2, keepdims=True)         # (1, C, 1)
    sq_sc[...] += jnp.sum(x * x, axis=2, keepdims=True)      # (1, C, 1)

    @pl.when(t == pl.num_programs(1) - 1)
    def _finalize():
        s = sum_sc[...]                                      # (1, C, 1)
        sq = sq_sc[...]                                      # (1, C, 1)
        hw = jnp.float32(hw_total)
        chw = jnp.float32(c_total * hw_total)

        # Instance-norm stats per channel (torch.var unbiased -> /(HW-1)).
        in_mean = s / hw
        in_var = (sq - hw * in_mean * in_mean) / (hw - 1.0)
        inv_in = lax.rsqrt(in_var + eps)                     # EUP, tiny

        # Layer-norm stats: reduce the tiny per-channel partials over C.
        ln_mean = jnp.sum(s, axis=1, keepdims=True) / chw            # (1,1,1)
        ln_var = (jnp.sum(sq, axis=1, keepdims=True)
                  - chw * ln_mean * ln_mean) / (chw - 1.0)
        inv_ln = lax.rsqrt(ln_var + eps)

        rho = rho_ref[...].astype(jnp.float32)               # (1, C, 1)
        gamma = gamma_ref[...].astype(jnp.float32)
        beta = beta_ref[...].astype(jnp.float32)

        scale = rho * inv_in + (1.0 - rho) * inv_ln
        shift = rho * (in_mean * inv_in) + (1.0 - rho) * (ln_mean * inv_ln)
        a_ref[...] = gamma * scale
        b_ref[...] = beta - gamma * shift


def _iln_apply_kernel(x_ref, a_ref, b_ref, o_ref):
    """Pass 2: out = x * A_c + B_c (single fused multiply-add + cast)."""
    x = x_ref[...].astype(jnp.float32)
    o_ref[...] = (x * a_ref[...] + b_ref[...]).astype(o_ref.dtype)


def _choose_hw_tile(hw, c, itemsize, target_bytes=4 << 20):
    """Largest multiple-of-128 divisor of HW whose (C, T) block stays under
    target_bytes; falls back to the full HW extent."""
    max_t = max(128, target_bytes // max(1, c * itemsize))
    if hw <= max_t:
        return hw
    t = (min(hw, max_t) // 128) * 128
    while t >= 128:
        if hw % t == 0:
            return t
        t -= 128
    return hw  # no aligned divisor found; use the monolithic block


def iln_forward(x, rho, gamma, beta, eps=1e-5):
    """ILN forward. x: (N, C, H, W); rho/gamma/beta: (1, C, 1, 1)."""
    N, C, H, W = x.shape
    HW = H * W
    x2 = x.reshape(N, C, HW)
    rho2 = rho.reshape(1, C, 1).astype(jnp.float32)
    gamma2 = gamma.reshape(1, C, 1).astype(jnp.float32)
    beta2 = beta.reshape(1, C, 1).astype(jnp.float32)

    itemsize = jnp.dtype(x.dtype).itemsize
    T = _choose_hw_tile(HW, C, itemsize)
    n_t = HW // T

    # Explicit scoped-VMEM budget: double-buffered in + out tiles + headroom,
    # clamped to v7x's 64 MiB physical VMEM.
    block_bytes = C * T * max(itemsize, 4)
    vmem_limit = int(min(64 << 20, max(32 << 20, 6 * block_bytes + (4 << 20))))

    x_spec = pl.BlockSpec((1, C, T), lambda b, t: (b, 0, t))
    par_spec = pl.BlockSpec((1, C, 1), lambda b, t: (0, 0, 0))
    coef_spec = pl.BlockSpec((1, C, 1), lambda b, t: (b, 0, 0))

    # ---- Pass 1: reduction over HW tiles -> per-channel affine coefficients.
    a_c, b_c = pl.pallas_call(
        functools.partial(_iln_stats_kernel, eps=eps, hw_total=HW, c_total=C),
        out_shape=(jax.ShapeDtypeStruct((N, C, 1), jnp.float32),
                   jax.ShapeDtypeStruct((N, C, 1), jnp.float32)),
        grid=(N, n_t),
        in_specs=[x_spec, par_spec, par_spec, par_spec],
        out_specs=[coef_spec, coef_spec],
        scratch_shapes=[pltpu.VMEM((1, C, 1), jnp.float32),
                        pltpu.VMEM((1, C, 1), jnp.float32)],
        compiler_params=pltpu.CompilerParams(
            dimension_semantics=("parallel", "arbitrary"),
            vmem_limit_bytes=vmem_limit),
        cost_estimate=pl.CostEstimate(
            flops=3 * N * C * HW,
            transcendentals=2 * N * C,
            bytes_accessed=N * C * HW * itemsize),
    )(x2, rho2, gamma2, beta2)

    # ---- Pass 2: lane-dense elementwise apply, both grid axes parallel.
    out = pl.pallas_call(
        _iln_apply_kernel,
        out_shape=jax.ShapeDtypeStruct((N, C, HW), x.dtype),
        grid=(N, n_t),
        in_specs=[x_spec, coef_spec, coef_spec],
        out_specs=x_spec,
        compiler_params=pltpu.CompilerParams(
            dimension_semantics=("parallel", "parallel"),
            vmem_limit_bytes=vmem_limit),
        cost_estimate=pl.CostEstimate(
            flops=2 * N * C * HW,
            transcendentals=0,
            bytes_accessed=2 * N * C * HW * itemsize),
    )(x2, a_c, b_c)

    return out.reshape(N, C, H, W)


def _iln_reference(x, rho, gamma, beta, eps=1e-5):
    """Pure-JAX reference matching the PyTorch module (unbiased variance)."""
    x = x.astype(jnp.float32)
    N, C, H, W = x.shape
    in_mean = jnp.mean(x, axis=(2, 3), keepdims=True)
    in_var = jnp.sum((x - in_mean) ** 2, axis=(2, 3), keepdims=True) / (H * W - 1)
    out_in = (x - in_mean) / jnp.sqrt(in_var + eps)
    ln_mean = jnp.mean(x, axis=(1, 2, 3), keepdims=True)
    ln_var = jnp.sum((x - ln_mean) ** 2, axis=(1, 2, 3), keepdims=True) / (C * H * W - 1)
    out_ln = (x - ln_mean) / jnp.sqrt(ln_var + eps)
    out = rho * out_in + (1 - rho) * out_ln
    return out * gamma + beta


if __name__ == "__main__":
    # Shapes consistent with the module forward: NCHW input, per-channel params.
    N, C, H, W = 2, 4, 16, 16
    key = jax.random.PRNGKey(0)
    x = jax.random.normal(key, (N, C, H, W), dtype=jnp.float32)

    # Deterministic parameter init, matching ILN.__init__:
    #   rho = 0, gamma = 1, beta = 0   (shape (1, C, 1, 1))
    rho = jnp.zeros((1, C, 1, 1), dtype=jnp.float32)
    gamma = jnp.ones((1, C, 1, 1), dtype=jnp.float32)
    beta = jnp.zeros((1, C, 1, 1), dtype=jnp.float32)

    out = jax.block_until_ready(iln_forward(x, rho, gamma, beta, eps=1e-5))
    ref = _iln_reference(x, rho, gamma, beta, eps=1e-5)
    assert out.shape == (N, C, H, W)
    assert jnp.allclose(out, ref, atol=1e-5, rtol=1e-5), "mismatch vs reference"

    # Extra check with non-trivial rho/gamma/beta to exercise the IN branch.
    rho_b = jnp.full((1, C, 1, 1), 0.3, dtype=jnp.float32)
    gamma_b = jnp.full((1, C, 1, 1), 1.2, dtype=jnp.float32)
    beta_b = jnp.full((1, C, 1, 1), -0.1, dtype=jnp.float32)
    out_b = jax.block_until_ready(iln_forward(x, rho_b, gamma_b, beta_b, eps=1e-5))
    ref_b = _iln_reference(x, rho_b, gamma_b, beta_b, eps=1e-5)
    assert jnp.allclose(out_b, ref_b, atol=1e-5, rtol=1e-5), "mismatch vs reference (mixed rho)"

    print("KERNEL_OK")
</pallas_src>

<mosaic_0001>
module attributes {stable_mosaic.version = 11 : i64} {
  func.func @_iln_stats_kernel(%arg0: i32, %arg1: i32, %arg2: memref<1x4x256xf32, #tpu.memory_space<vmem>>, %arg3: memref<1x4x1xf32, #tpu.memory_space<vmem>>, %arg4: memref<1x4x1xf32, #tpu.memory_space<vmem>>, %arg5: memref<1x4x1xf32, #tpu.memory_space<vmem>>, %arg6: memref<1x4x1xf32, #tpu.memory_space<vmem>>, %arg7: memref<1x4x1xf32, #tpu.memory_space<vmem>>, %arg8: memref<1x4x1xf32, #tpu.memory_space<vmem>>, %arg9: memref<1x4x1xf32, #tpu.memory_space<vmem>>) attributes {dimension_semantics = [#tpu.dimension_semantics<parallel>, #tpu.dimension_semantics<arbitrary>], iteration_bounds = array<i64: 2, 1>, scalar_prefetch = 0 : i64, scratch_operands = 2 : i64, tpu.core_type = #tpu.core_type<tc>, window_params = [{transform_indices = @transform_0, window_bounds = array<i64: 1, 4, 256>}, {pipeline_mode = #tpu.pipeline_mode<synchronous>, transform_indices = @transform_1, window_bounds = array<i64: 1, 4, 1>}, {pipeline_mode = #tpu.pipeline_mode<synchronous>, transform_indices = @transform_2, window_bounds = array<i64: 1, 4, 1>}, {pipeline_mode = #tpu.pipeline_mode<synchronous>, transform_indices = @transform_3, window_bounds = array<i64: 1, 4, 1>}, {transform_indices = @transform_4, window_bounds = array<i64: 1, 4, 1>}, {transform_indices = @transform_5, window_bounds = array<i64: 1, 4, 1>}]} {
    %c0_i32 = arith.constant 0 : i32
    %0 = arith.cmpi eq, %arg1, %c0_i32 : i32
    %1 = arith.extui %0 : i1 to i32
    %c0_i32_0 = arith.constant 0 : i32
    %2 = arith.cmpi ne, %1, %c0_i32_0 : i32
    scf.if %2 {
      %cst_18 = arith.constant 0.000000e+00 : f32
      %18 = vector.broadcast %cst_18 : f32 to vector<1x4x1xf32>
      %c0_19 = arith.constant 0 : index
      %c0_20 = arith.constant 0 : index
      %c0_21 = arith.constant 0 : index
      %19 = vector.load %arg8[%c0_19, %c0_20, %c0_21] : memref<1x4x1xf32, #tpu.memory_space<vmem>>, vector<1x4x1xf32>
      tpu.vector_store %arg8[%c0_19, %c0_20, %c0_21], %18 {strides = array<i32>} : memref<1x4x1xf32, #tpu.memory_space<vmem>>, vector<1x4x1xf32>,
      %cst_22 = arith.constant 0.000000e+00 : f32
      %20 = vector.broadcast %cst_22 : f32 to vector<1x4x1xf32>
      %c0_23 = arith.constant 0 : index
      %c0_24 = arith.constant 0 : index
      %c0_25 = arith.constant 0 : index
      %21 = vector.load %arg9[%c0_23, %c0_24, %c0_25] : memref<1x4x1xf32, #tpu.memory_space<vmem>>, vector<1x4x1xf32>
      tpu.vector_store %arg9[%c0_23, %c0_24, %c0_25], %20 {strides = array<i32>} : memref<1x4x1xf32, #tpu.memory_space<vmem>>, vector<1x4x1xf32>,
    } else {
    }
    %c0 = arith.constant 0 : index
    %c0_1 = arith.constant 0 : index
    %c0_2 = arith.constant 0 : index
    %3 = vector.load %arg2[%c0, %c0_1, %c0_2] : memref<1x4x256xf32, #tpu.memory_space<vmem>>, vector<1x4x256xf32>
    %c0_3 = arith.constant 0 : index
    %c0_4 = arith.constant 0 : index
    %c0_5 = arith.constant 0 : index
    %4 = vector.load %arg8[%c0_3, %c0_4, %c0_5] : memref<1x4x1xf32, #tpu.memory_space<vmem>>, vector<1x4x1xf32>
    %cst = arith.constant dense<0.000000e+00> : vector<1x4xf32>
    %5 = vector.multi_reduction <add>, %3, %cst [2] : vector<1x4x256xf32> to vector<1x4xf32>
    %6 = vector.shape_cast %5 : vector<1x4xf32> to vector<1x4x1xf32>
    %7 = arith.addf %4, %6 : vector<1x4x1xf32>
    %c0_6 = arith.constant 0 : index
    %c0_7 = arith.constant 0 : index
    %c0_8 = arith.constant 0 : index
    %8 = vector.load %arg8[%c0_6, %c0_7, %c0_8] : memref<1x4x1xf32, #tpu.memory_space<vmem>>, vector<1x4x1xf32>
    tpu.vector_store %arg8[%c0_6, %c0_7, %c0_8], %7 {strides = array<i32>} : memref<1x4x1xf32, #tpu.memory_space<vmem>>, vector<1x4x1xf32>,
    %c0_9 = arith.constant 0 : index
    %c0_10 = arith.constant 0 : index
    %c0_11 = arith.constant 0 : index
    %9 = vector.load %arg9[%c0_9, %c0_10, %c0_11] : memref<1x4x1xf32, #tpu.memory_space<vmem>>, vector<1x4x1xf32>
    %10 = arith.mulf %3, %3 : vector<1x4x256xf32>
    %cst_12 = arith.constant dense<0.000000e+00> : vector<1x4xf32>
    %11 = vector.multi_reduction <add>, %10, %cst_12 [2] : vector<1x4x256xf32> to vector<1x4xf32>
    %12 = vector.shape_cast %11 : vector<1x4xf32> to vector<1x4x1xf32>
    %13 = arith.addf %9, %12 : vector<1x4x1xf32>
    %c0_13 = arith.constant 0 : index
    %c0_14 = arith.constant 0 : index
    %c0_15 = arith.constant 0 : index
    %14 = vector.load %arg9[%c0_13, %c0_14, %c0_15] : memref<1x4x1xf32, #tpu.memory_space<vmem>>, vector<1x4x1xf32>
    tpu.vector_store %arg9[%c0_13, %c0_14, %c0_15], %13 {strides = array<i32>} : memref<1x4x1xf32, #tpu.memory_space<vmem>>, vector<1x4x1xf32>,
    %c0_i32_16 = arith.constant 0 : i32
    %15 = arith.cmpi eq, %arg1, %c0_i32_16 : i32
    %16 = arith.extui %15 : i1 to i32
    %c0_i32_17 = arith.constant 0 : i32
    %17 = arith.cmpi ne, %16, %c0_i32_17 : i32
    scf.if %17 {
      %c0_18 = arith.constant 0 : index
      %c0_19 = arith.constant 0 : index
      %c0_20 = arith.constant 0 : index
      %18 = vector.load %arg8[%c0_18, %c0_19, %c0_20] : memref<1x4x1xf32, #tpu.memory_space<vmem>>, vector<1x4x1xf32>
      %c0_21 = arith.constant 0 : index
      %c0_22 = arith.constant 0 : index
      %c0_23 = arith.constant 0 : index
      %19 = vector.load %arg9[%c0_21, %c0_22, %c0_23] : memref<1x4x1xf32, #tpu.memory_space<vmem>>, vector<1x4x1xf32>
      %cst_24 = arith.constant 2.560000e+02 : f32
      %20 = vector.broadcast %cst_24 : f32 to vector<1x4x1xf32>
      %21 = arith.divf %18, %20 : vector<1x4x1xf32>
      %cst_25 = arith.constant 2.560000e+02 : f32
      %22 = vector.broadcast %cst_25 : f32 to vector<1x4x1xf32>
      %23 = arith.mulf %22, %21 : vector<1x4x1xf32>
      %24 = arith.mulf %23, %21 : vector<1x4x1xf32>
      %25 = arith.subf %19, %24 : vector<1x4x1xf32>
      %cst_26 = arith.constant 2.560000e+02 : f32
      %cst_27 = arith.constant 1.000000e+00 : f32
      %26 = arith.subf %cst_26, %cst_27 : f32
      %27 = vector.broadcast %26 : f32 to vector<1x4x1xf32>
      %28 = arith.divf %25, %27 : vector<1x4x1xf32>
      %cst_28 = arith.constant 9.99999974E-6 : f32
      %29 = vector.broadcast %cst_28 : f32 to vector<1x4x1xf32>
      %30 = arith.addf %28, %29 : vector<1x4x1xf32>
      %31 = math.rsqrt %30 : vector<1x4x1xf32>
      %cst_29 = arith.constant dense<0.000000e+00> : vector<1x1xf32>
      %32 = vector.multi_reduction <add>, %18, %cst_29 [1] : vector<1x4x1xf32> to vector<1x1xf32>
      %33 = vector.shape_cast %32 : vector<1x1xf32> to vector<1x1x1xf32>
      %cst_30 = arith.constant 1.024000e+03 : f32
      %34 = vector.broadcast %cst_30 : f32 to vector<1x1x1xf32>
      %35 = arith.divf %33, %34 : vector<1x1x1xf32>
      %cst_31 = arith.constant dense<0.000000e+00> : vector<1x1xf32>
      %36 = vector.multi_reduction <add>, %19, %cst_31 [1] : vector<1x4x1xf32> to vector<1x1xf32>
      %37 = vector.shape_cast %36 : vector<1x1xf32> to vector<1x1x1xf32>
      %cst_32 = arith.constant 1.024000e+03 : f32
      %38 = vector.broadcast %cst_32 : f32 to vector<1x1x1xf32>
      %39 = arith.mulf %38, %35 : vector<1x1x1xf32>
      %40 = arith.mulf %39, %35 : vector<1x1x1xf32>
      %41 = arith.subf %37, %40 : vector<1x1x1xf32>
      %cst_33 = arith.constant 1.024000e+03 : f32
      %cst_34 = arith.constant 1.000000e+00 : f32
      %42 = arith.subf %cst_33, %cst_34 : f32
      %43 = vector.broadcast %42 : f32 to vector<1x1x1xf32>
      %44 = arith.divf %41, %43 : vector<1x1x1xf32>
      %cst_35 = arith.constant 9.99999974E-6 : f32
      %45 = vector.broadcast %cst_35 : f32 to vector<1x1x1xf32>
      %46 = arith.addf %44, %45 : vector<1x1x1xf32>
      %47 = math.rsqrt %46 : vector<1x1x1xf32>
      %c0_36 = arith.constant 0 : index
      %c0_37 = arith.constant 0 : index
      %c0_38 = arith.constant 0 : index
      %48 = vector.load %arg3[%c0_36, %c0_37, %c0_38] : memref<1x4x1xf32, #tpu.memory_space<vmem>>, vector<1x4x1xf32>
      %c0_39 = arith.constant 0 : index
      %c0_40 = arith.constant 0 : index
      %c0_41 = arith.constant 0 : index
      %49 = vector.load %arg4[%c0_39, %c0_40, %c0_41] : memref<1x4x1xf32, #tpu.memory_space<vmem>>, vector<1x4x1xf32>
      %c0_42 = arith.constant 0 : index
      %c0_43 = arith.constant 0 : index
      %c0_44 = arith.constant 0 : index
      %50 = vector.load %arg5[%c0_42, %c0_43, %c0_44] : memref<1x4x1xf32, #tpu.memory_space<vmem>>, vector<1x4x1xf32>
      %51 = arith.mulf %48, %31 : vector<1x4x1xf32>
      %cst_45 = arith.constant 1.000000e+00 : f32
      %52 = vector.broadcast %cst_45 : f32 to vector<1x4x1xf32>
      %53 = arith.subf %52, %48 : vector<1x4x1xf32>
      %54 = vector.broadcast %47 : vector<1x1x1xf32> to vector<1x4x1xf32>
      %55 = arith.mulf %53, %54 : vector<1x4x1xf32>
      %56 = arith.addf %51, %55 : vector<1x4x1xf32>
      %57 = arith.mulf %21, %31 : vector<1x4x1xf32>
      %58 = arith.mulf %48, %57 : vector<1x4x1xf32>
      %cst_46 = arith.constant 1.000000e+00 : f32
      %59 = vector.broadcast %cst_46 : f32 to vector<1x4x1xf32>
      %60 = arith.subf %59, %48 : vector<1x4x1xf32>
      %61 = arith.mulf %35, %47 : vector<1x1x1xf32>
      %62 = vector.broadcast %61 : vector<1x1x1xf32> to vector<1x4x1xf32>
      %63 = arith.mulf %60, %62 : vector<1x4x1xf32>
      %64 = arith.addf %58, %63 : vector<1x4x1xf32>
      %65 = arith.mulf %49, %56 : vector<1x4x1xf32>
      %c0_47 = arith.constant 0 : index
      %c0_48 = arith.constant 0 : index
      %c0_49 = arith.constant 0 : index
      %66 = vector.load %arg6[%c0_47, %c0_48, %c0_49] : memref<1x4x1xf32, #tpu.memory_space<vmem>>, vector<1x4x1xf32>
      tpu.vector_store %arg6[%c0_47, %c0_48, %c0_49], %65 {strides = array<i32>} : memref<1x4x1xf32, #tpu.memory_space<vmem>>, vector<1x4x1xf32>,
      %67 = arith.mulf %49, %64 : vector<1x4x1xf32>
      %68 = arith.subf %50, %67 : vector<1x4x1xf32>
      %c0_50 = arith.constant 0 : index
      %c0_51 = arith.constant 0 : index
      %c0_52 = arith.constant 0 : index
      %69 = vector.load %arg7[%c0_50, %c0_51, %c0_52] : memref<1x4x1xf32, #tpu.memory_space<vmem>>, vector<1x4x1xf32>
      tpu.vector_store %arg7[%c0_50, %c0_51, %c0_52], %68 {strides = array<i32>} : memref<1x4x1xf32, #tpu.memory_space<vmem>>, vector<1x4x1xf32>,
    } else {
    }
    return
  }
  func.func @transform_0(%arg0: i32, %arg1: i32) -> (i32, i32, i32) {
    %c0_i32 = arith.constant 0 : i32
    %c0_i32_0 = arith.constant 0 : i32
    return %arg0, %c0_i32, %arg1 : i32, i32, i32
  }
  func.func @transform_1(%arg0: i32, %arg1: i32) -> (i32, i32, i32) {
    %c0_i32 = arith.constant 0 : i32
    %c0_i32_0 = arith.constant 0 : i32
    %c0_i32_1 = arith.constant 0 : i32
    %c0_i32_2 = arith.constant 0 : i32
    return %c0_i32, %c0_i32_0, %c0_i32_1 : i32, i32, i32
  }
  func.func @transform_2(%arg0: i32, %arg1: i32) -> (i32, i32, i32) {
    %c0_i32 = arith.constant 0 : i32
    %c0_i32_0 = arith.constant 0 : i32
    %c0_i32_1 = arith.constant 0 : i32
    %c0_i32_2 = arith.constant 0 : i32
    return %c0_i32, %c0_i32_0, %c0_i32_1 : i32, i32, i32
  }
  func.func @transform_3(%arg0: i32, %arg1: i32) -> (i32, i32, i32) {
    %c0_i32 = arith.constant 0 : i32
    %c0_i32_0 = arith.constant 0 : i32
    %c0_i32_1 = arith.constant 0 : i32
    %c0_i32_2 = arith.constant 0 : i32
    return %c0_i32, %c0_i32_0, %c0_i32_1 : i32, i32, i32
  }
  func.func @transform_4(%arg0: i32, %arg1: i32) -> (i32, i32, i32) {
    %c0_i32 = arith.constant 0 : i32
    %c0_i32_0 = arith.constant 0 : i32
    %c0_i32_1 = arith.constant 0 : i32
    return %arg0, %c0_i32, %c0_i32_0 : i32, i32, i32
  }
  func.func @transform_5(%arg0: i32, %arg1: i32) -> (i32, i32, i32) {
    %c0_i32 = arith.constant 0 : i32
    %c0_i32_0 = arith.constant 0 : i32
    %c0_i32_1 = arith.constant 0 : i32
    return %arg0, %c0_i32, %c0_i32_0 : i32, i32, i32
  }
}

</mosaic_0001>

<llo_original>
// kernel: tpu_custom_call.1
$region0: #{tpu_custom_call.1}
  #allocation0 [shape = 'u32[]', space=smem, size = 0x4, offset = 0x4, fixed_abs, tag = 'smem constant byte address 0x4 - core index']
  #allocation1 [shape = 'u32[144,128]{1,0:T(1,128)}', space=vmem, size = 0x12000, scoped, tag = 'internal scratch']
  #allocation2 [shape = 'f32[1,4,1]{2,1,0:T(4,128)}', space=vmem, size = 0x800, scoped, tag = 'scratch operand']
  #allocation3 [shape = 'f32[1,4,1]{2,1,0:T(4,128)}', space=vmem, size = 0x800, scoped, tag = 'scratch operand']
  %s0 = inlined_call_operand.hbm [shape: f32[2,4,256], index: 0, kind: input, shape index: {}]
  %s1 = inlined_call_operand.vmem [shape: f32[1,4,1], index: 1, kind: input, shape index: {}]
  %s2 = inlined_call_operand.vmem [shape: f32[1,4,1], index: 2, kind: input, shape index: {}]
  %s3 = inlined_call_operand.vmem [shape: f32[1,4,1], index: 3, kind: input, shape index: {}]
  %s4 = inlined_call_operand.vmem [shape: f32[2,4,1], index: 4, kind: output, shape index: {0}]
  %s5 = inlined_call_operand.vmem [shape: f32[2,4,1], index: 5, kind: output, shape index: {1}]
  %6 = xla_tuple %s4, %s5
  %s7 = sld [smem:[#allocation0]]
  $region69: #{tpu_custom_call.1} parent=0
    _
  %s9 = ssub.s32 1, %s7
  %s10 = scalar_select 0, %s9, %s7
  $region1: #{tpu_custom_call.1} parent=0
    #allocation4 [shape = 'u8[8192]{0}', space=vmem, size = 0x2000, scoped, tag = 'input window, operand 0']
    #allocation5 [shape = 's32[2]{0}', space=sflag, size = 0x8, scoped, tag = 'scoped memory for tpu_custom_call.1']
    %11 = vsyncpa [#allocation5], 0
    %s12 = scalar_lea.sflag [#allocation5], 1
    %13 = vsyncpa %s12, 0
    loop: start=0, step=1, limit=4
    $region2: #{tpu_custom_call.1} parent=1 // loop_pre_header
      _
    $region3: #{tpu_custom_call.1} parent=1 // loop_header
      %s15 = sphi 0, %s19
      %p16 = scmp.ge.s32.totalorder %s15, 4
      %s22 = sphi 0, %s34
      %s23 = sphi 0, %s30
      %s24 = sphi 0, %s22
      %s25 = sphi 0, %s23
      %s26 = sphi 0, %s24
      %s27 = sphi 0, %s25
      %s39 = sphi 0, %s41
      %s42 = sphi 0, %s39
      %s43 = sphi 0, %s42
      %s59 = sphi 0, %s43
      %s63 = sphi 0, %s63
      %s65 = sphi 0, %s63
      %s66 = sphi 0, %s65
      %s80 = sphi 0, %s66
      %s84 = sphi 0, %s84
      %s86 = sphi 0, %s84
      %s87 = sphi 0, %s86
      %s101 = sphi 0, %s87
      %s105 = sphi 0, %s105
      %s107 = sphi 0, %s105
      %s108 = sphi 0, %s107
      %s122 = sphi 0, %s108
      %s128 = sphi 0, %s130
      %s131 = sphi 0, %s128
      %s132 = sphi 0, %s131
      %s148 = sphi 0, %s132
      %s154 = sphi 0, %s156
      %s157 = sphi 0, %s154
      %s158 = sphi 0, %s157
      %s174 = sphi 0, %s158
    $region4: #{tpu_custom_call.1} parent=1 // loop_header_branch
      %18 = sbr.rel (%p16) target = $region8
    $region5: #{tpu_custom_call.1} parent=1 // loop_body
      %s20 = ssub.s32 %s15, 1
      %s21 = ssub.s32 %s15, 2
      %s28 = sadd.s32 1, %s23
      %p29 = scmp.ge.s32.totalorder %s28, 1
      %s30 = scalar_select %p29, 0, %s28
      %s31 = sadd.s32 1, %s22
      %s32 = scalar_select %p29, %s31, %s22
      %p33 = scmp.ge.s32.totalorder %s32, 2
      %s34 = scalar_select %p33, 0, %s32
      %s35 = ssub.s32 %s22, %s34
      %s36 = ssub.s32 %s23, %s30
      %s37 = sor.u32 %s35, %s36
      %p38 = scmp.eq.s32.totalorder %s37, 0
      %s40 = sadd.s32 %s39, 1
      %s41 = scalar_select %p38, %s39, %s40
      %p44 = pneg %p38
      %p45 = scmp.eq.s32.totalorder %s15, 1
      %p46 = por %p44, %p45
      %p47 = scmp.ne.s32.totalorder %s39, %s42
      %p48 = scmp.eq.s32.totalorder %s15, 0
      %p49 = por %p47, %p48
      %p50 = scmp.ne.s32.totalorder %s39, %s42
      %p51 = scmp.eq.s32.totalorder %s20, 1
      %p52 = por %p50, %p51
      %p53 = scmp.ne.s32.totalorder %s42, %s43
      %p54 = scmp.eq.s32.totalorder %s20, 0
      %p55 = por %p53, %p54
      %p56 = scmp.ne.s32.totalorder %s42, %s43
      %p57 = scmp.eq.s32.totalorder %s21, 1
      %p58 = por %p56, %p57
      %p60 = scmp.ne.s32.totalorder %s43, %s59
      %p61 = scmp.eq.s32.totalorder %s21, 0
      %p62 = por %p60, %p61
      %s64 = sadd.s32 %s63, 1
      %p67 = scmp.eq.s32.totalorder %s15, 1
      %p68 = scmp.ne.s32.totalorder %s63, %s65
      %p69 = scmp.eq.s32.totalorder %s15, 0
      %p70 = por %p68, %p69
      %p71 = scmp.ne.s32.totalorder %s63, %s65
      %p72 = scmp.eq.s32.totalorder %s20, 1
      %p73 = por %p71, %p72
      %p74 = scmp.ne.s32.totalorder %s65, %s66
      %p75 = scmp.eq.s32.totalorder %s20, 0
      %p76 = por %p74, %p75
      %p77 = scmp.ne.s32.totalorder %s65, %s66
      %p78 = scmp.eq.s32.totalorder %s21, 1
      %p79 = por %p77, %p78
      %p81 = scmp.ne.s32.totalorder %s66, %s80
      %p82 = scmp.eq.s32.totalorder %s21, 0
      %p83 = por %p81, %p82
      %s85 = sadd.s32 %s84, 1
      %p88 = scmp.eq.s32.totalorder %s15, 1
      %p89 = scmp.ne.s32.totalorder %s84, %s86
      %p90 = scmp.eq.s32.totalorder %s15, 0
      %p91 = por %p89, %p90
      %p92 = scmp.ne.s32.totalorder %s84, %s86
      %p93 = scmp.eq.s32.totalorder %s20, 1
      %p94 = por %p92, %p93
      %p95 = scmp.ne.s32.totalorder %s86, %s87
      %p96 = scmp.eq.s32.totalorder %s20, 0
      %p97 = por %p95, %p96
      %p98 = scmp.ne.s32.totalorder %s86, %s87
      %p99 = scmp.eq.s32.totalorder %s21, 1
      %p100 = por %p98, %p99
      %p102 = scmp.ne.s32.totalorder %s87, %s101
      %p103 = scmp.eq.s32.totalorder %s21, 0
      %p104 = por %p102, %p103
      %s106 = sadd.s32 %s105, 1
      %p109 = scmp.eq.s32.totalorder %s15, 1
      %p110 = scmp.ne.s32.totalorder %s105, %s107
      %p111 = scmp.eq.s32.totalorder %s15, 0
      %p112 = por %p110, %p111
      %p113 = scmp.ne.s32.totalorder %s105, %s107
      %p114 = scmp.eq.s32.totalorder %s20, 1
      %p115 = por %p113, %p114
      %p116 = scmp.ne.s32.totalorder %s107, %s108
      %p117 = scmp.eq.s32.totalorder %s20, 0
      %p118 = por %p116, %p117
      %p119 = scmp.ne.s32.totalorder %s107, %s108
      %p120 = scmp.eq.s32.totalorder %s21, 1
      %p121 = por %p119, %p120
      %p123 = scmp.ne.s32.totalorder %s108, %s122
      %p124 = scmp.eq.s32.totalorder %s21, 0
      %p125 = por %p123, %p124
      %s126 = ssub.s32 %s22, %s34
      %p127 = scmp.eq.s32.totalorder %s126, 0
      %s129 = sadd.s32 %s128, 1
      %s130 = scalar_select %p127, %s128, %s129
      %p133 = pneg %p127
      %p134 = scmp.eq.s32.totalorder %s15, 1
      %p135 = por %p133, %p134
      %p136 = scmp.ne.s32.totalorder %s128, %s131
      %p137 = scmp.eq.s32.totalorder %s15, 0
      %p138 = por %p136, %p137
      %p139 = scmp.ne.s32.totalorder %s128, %s131
      %p140 = scmp.eq.s32.totalorder %s20, 1
      %p141 = por %p139, %p140
      %p142 = scmp.ne.s32.totalorder %s131, %s132
      %p143 = scmp.eq.s32.totalorder %s20, 0
      %p144 = por %p142, %p143
      %p145 = scmp.ne.s32.totalorder %s131, %s132
      %p146 = scmp.eq.s32.totalorder %s21, 1
      %p147 = por %p145, %p146
      %p149 = scmp.ne.s32.totalorder %s132, %s148
      %p150 = scmp.eq.s32.totalorder %s21, 0
      %p151 = por %p149, %p150
      %s152 = ssub.s32 %s22, %s34
      %p153 = scmp.eq.s32.totalorder %s152, 0
      %s155 = sadd.s32 %s154, 1
      %s156 = scalar_select %p153, %s154, %s155
      %p159 = pneg %p153
      %p160 = scmp.eq.s32.totalorder %s15, 1
      %p161 = por %p159, %p160
      %p162 = scmp.ne.s32.totalorder %s154, %s157
      %p163 = scmp.eq.s32.totalorder %s15, 0
      %p164 = por %p162, %p163
      %p165 = scmp.ne.s32.totalorder %s154, %s157
      %p166 = scmp.eq.s32.totalorder %s20, 1
      %p167 = por %p165, %p166
      %p168 = scmp.ne.s32.totalorder %s157, %s158
      %p169 = scmp.eq.s32.totalorder %s20, 0
      %p170 = por %p168, %p169
      %p171 = scmp.ne.s32.totalorder %s157, %s158
      %p172 = scmp.eq.s32.totalorder %s21, 1
      %p173 = por %p171, %p172
      %p175 = scmp.ne.s32.totalorder %s158, %s174
      %p176 = scmp.eq.s32.totalorder %s21, 0
      %p177 = por %p175, %p176
      %p178 = scmp.le.s32.totalorder 1, %s15
      %p179 = scmp.lt.s32.totalorder %s15, 3
      %p180 = pnand %p178, %p179
      %p181 = pneg %p180
      // Predicated region
      $region9: #{tpu_custom_call.1} parent=5 // pred_check
        _
      $region10: #{tpu_custom_call.1} parent=5 // pred_check_branch
        %183 = sbr.rel (%p180) target = $region12
      $region11: #{tpu_custom_call.1} parent=5 // pred_region
        %s184 = ssub.s32 %s15, 1
        // Predicated region
        $region13: #{tpu_custom_call.1} parent=11 // pred_check
          %p185 = pneg %p76
        $region14: #{tpu_custom_call.1} parent=11 // pred_check_branch
          %187 = sbr.rel (%p185) target = $region16
        $region15: #{tpu_custom_call.1} parent=11 // pred_region
          _
        $region16: #{tpu_custom_call.1} parent=11 // pred_fallthru
          _
        // Predicated region
        $region17: #{tpu_custom_call.1} parent=11 // pred_check
          %p188 = pneg %p97
        $region18: #{tpu_custom_call.1} parent=11 // pred_check_branch
          %190 = sbr.rel (%p188) target = $region20
        $region19: #{tpu_custom_call.1} parent=11 // pred_region
          _
        $region20: #{tpu_custom_call.1} parent=11 // pred_fallthru
          _
        // Predicated region
        $region21: #{tpu_custom_call.1} parent=11 // pred_check
          %p191 = pneg %p118
        $region22: #{tpu_custom_call.1} parent=11 // pred_check_branch
          %193 = sbr.rel (%p191) target = $region24
        $region23: #{tpu_custom_call.1} parent=11 // pred_region
          _
        $region24: #{tpu_custom_call.1} parent=11 // pred_fallthru
          _
      $region12: #{tpu_custom_call.1} parent=5 // pred_fallthru
        _
      %p194 = scmp.lt.s32.totalorder %s15, 2
      // Predicated region
      $region25: #{tpu_custom_call.1} parent=5 // pred_check
        %p195 = pneg %p194
      $region26: #{tpu_custom_call.1} parent=5 // pred_check_branch
        %197 = sbr.rel (%p195) target = $region28
      $region27: #{tpu_custom_call.1} parent=5 // pred_region
        // Predicated region
        $region29: #{tpu_custom_call.1} parent=27 // pred_check
          %p198 = pneg %p49
        $region30: #{tpu_custom_call.1} parent=27 // pred_check_branch
          %200 = sbr.rel (%p198) target = $region32
        $region31: #{tpu_custom_call.1} parent=27 // pred_region
          %s201 = sand.u32 %s39, 1
          %s202 = scalar_lea.sflag [#allocation5], %s201
          %s203 = sand.u32 %s39, 1
          %s204 = smul.addr %s203, 8
          %s205 = scalar_lea.vmem [#allocation4], %s204
          %s206 = smul.u32 2, %s23
          %s208 = ssub.s32 128, 128
          %209 = vsyncadd %s202, %s208
          %s210 = smul.addr %s22, 2
          %s211 = sadd.s32 %s206, %s210
          %s212 = smul.addr %s211, 64
          %s213 = scalar_lea.hbm %s0, %s212
          %s215 = sshll.u32 %s205, 4
          %s216 = int_to_ptr.vmem [resolvable:$true] %s215
          %218 = dma.hbm_to_vmem [thread:$0]  %s213, 128, %s216, %s202
        $region32: #{tpu_custom_call.1} parent=27 // pred_fallthru
          _
      $region28: #{tpu_custom_call.1} parent=5 // pred_fallthru
        _
      %p219 = scmp.le.s32.totalorder 1, %s15
      %p220 = scmp.lt.s32.totalorder %s15, 3
      %p221 = pnand %p219, %p220
      %p222 = pneg %p221
      // Predicated region
      $region33: #{tpu_custom_call.1} parent=5 // pred_check
        _
      $region34: #{tpu_custom_call.1} parent=5 // pred_check_branch
        %224 = sbr.rel (%p221) target = $region36
      $region35: #{tpu_custom_call.1} parent=5 // pred_region
        %s225 = ssub.s32 %s15, 1
        %s226 = sand.u32 %s42, 1
        %s227 = scalar_lea.sflag [#allocation5], %s226
        %s228 = sand.u32 %s42, 1
        %s229 = smul.addr %s228, 8
        %s230 = scalar_lea.vmem [#allocation4], %s229
        // Predicated region
        $region37: #{tpu_custom_call.1} parent=35 // pred_check
          %p231 = pneg %p55
        $region38: #{tpu_custom_call.1} parent=35 // pred_check_branch
          %233 = sbr.rel (%p231) target = $region40
        $region39: #{tpu_custom_call.1} parent=35 // pred_region
          %234 = dma.done %s227, 128
        $region40: #{tpu_custom_call.1} parent=35 // pred_fallthru
          _
        %s235 = sand.u32 %s42, 1
        %s236 = scalar_lea.sflag [#allocation5], %s235
        %s237 = sand.u32 %s42, 1
        %s238 = smul.addr %s237, 8
        %s239 = scalar_lea.vmem [#allocation4], %s238
        %p240 = pneg %p55
        %p241 = pneg %p52
        %p242 = pneg %p76
        %p243 = pneg %p73
        %p244 = pneg %p97
        %p245 = pneg %p94
        %p246 = pneg %p118
        %p247 = pneg %p115
        %p248 = pneg %p144
        %p249 = pneg %p141
        %p250 = scmp.lt.s32.totalorder %s24, 1
        %s251 = scalar_select %p250, %s24, 1
        %s252 = smul.addr %s251, 4
        %s253 = scalar_lea.vmem %s4, %s252
        %p254 = pneg %p170
        %p255 = pneg %p167
        %p256 = scmp.lt.s32.totalorder %s24, 1
        %s257 = scalar_select %p256, %s24, 1
        %s258 = smul.addr %s257, 4
        %s259 = scalar_lea.vmem %s5, %s258
        %s260 = smul.u32 2, %s25
        %p261 = scmp.lt.s32.totalorder %s24, 1
        %s262 = scalar_select %p261, %s24, 1
        %s263 = smul.addr %s262, 4
        %s264 = scalar_lea.vmem %s4, %s263
        %p265 = scmp.lt.s32.totalorder %s24, 1
        %s266 = scalar_select %p265, %s24, 1
        %s267 = smul.addr %s266, 4
        %s268 = scalar_lea.vmem %s5, %s267
        %p269 = scmp.eq.s32.totalorder %s25, 0
        // Predicated region
        $region41: #{tpu_custom_call.1} parent=35 // pred_check
          %p270 = pneg %p269
        $region42: #{tpu_custom_call.1} parent=35 // pred_check_branch
          %272 = sbr.rel (%p270) target = $region44
        $region43: #{tpu_custom_call.1} parent=35 // pred_region
          %vm273 = vcmask 3072
          %274 = vst.msk [vmem:[#allocation2] sm:$0xf] %vm273, 0.0
          %275 = vst.msk [vmem:[#allocation3] sm:$0xf] %vm273, 0.0
        $region44: #{tpu_custom_call.1} parent=35 // pred_fallthru
          _
        %v276 = vld [vmem:[%s230] sm:$0xff]
        %v277 = vld [vmem:[#allocation2] sm:$0xf]
        %v279 = vcombine.high %v276, %v276
        %vm281 = vcmask 1043456
        %v282 = vsel %vm281, %v276, 0.0
        %v283 = vsel %vm281, %v279, 0.0
        %v284 = vadd.f32 %v282, %v283
        %285 = vadd.xlane.f32.xlu0 %v284
        %v286 = vpop.xlane.xlu0 %285
        %v287 = vadd.f32 %v277, %v286
        %vm288 = vcmask 3072
        %289 = vst.msk [vmem:[#allocation2] sm:$0xf] %vm288, %v287
        %v290 = vld [vmem:[#allocation3] sm:$0xf]
        %v291 = vmul.f32 %v276, %v276
        %v293 = vcombine.high %v291, %v291
        %v295 = vsel %vm281, %v291, 0.0
        %v296 = vsel %vm281, %v293, 0.0
        %v297 = vadd.f32 %v295, %v296
        %298 = vadd.xlane.f32.xlu0 %v297
        %v299 = vpop.xlane.xlu0 %298
        %v300 = vadd.f32 %v290, %v299
        %301 = vst.msk [vmem:[#allocation3] sm:$0xf] %vm288, %v300
        // Predicated region
        $region45: #{tpu_custom_call.1} parent=35 // pred_check
          %p302 = pneg %p269
        $region46: #{tpu_custom_call.1} parent=35 // pred_check_branch
          %304 = sbr.rel (%p302) target = $region48
        $region47: #{tpu_custom_call.1} parent=35 // pred_region
          %v305 = vld [vmem:[#allocation2] sm:$0xf]
          %v306 = vld [vmem:[#allocation3] sm:$0xf]
          %v307 = vrcp.pop 256.0
          %v308 = vmul.f32 %v305, %v307
          %v309 = vmul.f32 %v308, 256.0
          %v310 = vmul.f32 %v309, %v308
          %v311 = vsub.f32 %v306, %v310
          %v312 = vrcp.pop 255.0
          %v313 = vmul.f32 %v311, %v312
          %v314 = vadd.f32 %v313, 1e-05
          %v315 = vrsqrt.pop %v314
          %v316 = vsel %vm288, %v305, 0.0
          %v317 = vrot.slane %v316, 4
          %v318 = vadd.f32 %v316, %v317
          %v319 = vrot.slane %v318, 2
          %v320 = vadd.f32 %v318, %v319
          %v321 = vrot.slane %v320, 1
          %v322 = vadd.f32 %v320, %v321
          %v323 = vrcp.pop 1024.0
          %v324 = vmul.f32 %v322, %v323
          %v325 = vsel %vm288, %v306, 0.0
          %v326 = vrot.slane %v325, 4
          %v327 = vadd.f32 %v325, %v326
          %v328 = vrot.slane %v327, 2
          %v329 = vadd.f32 %v327, %v328
          %v330 = vrot.slane %v329, 1
          %v331 = vadd.f32 %v329, %v330
          %v332 = vmul.f32 %v324, 1024.0
          %v333 = vmul.f32 %v332, %v324
          %v334 = vsub.f32 %v331, %v333
          %v335 = vrcp.pop 1023.0
          %v336 = vmul.f32 %v334, %v335
          %v337 = vadd.f32 %v336, 1e-05
          %v338 = vrsqrt.pop %v337
          %v339 = vld [vmem:[%s1] sm:$0xf]
          %v340 = vld [vmem:[%s2] sm:$0xf]
          %v341 = vld [vmem:[%s3] sm:$0xf]
          %v342 = vmul.f32 %v339, %v315
          %v343 = vsub.f32 1.0, %v339
          %v344 = vmul.f32 %v343, %v338
          %v345 = vadd.f32 %v342, %v344
          %v346 = vmul.f32 %v308, %v315
          %v347 = vmul.f32 %v339, %v346
          %v348 = vmul.f32 %v324, %v338
          %v349 = vmul.f32 %v343, %v348
          %v350 = vadd.f32 %v347, %v349
          %v351 = vmul.f32 %v340, %v345
          %352 = vst.msk [vmem:[%s264] sm:$0xf] %vm288, %v351
          %v353 = vmul.f32 %v340, %v350
          %v354 = vsub.f32 %v341, %v353
          %355 = vst.msk [vmem:[%s268] sm:$0xf] %vm288, %v354
        $region48: #{tpu_custom_call.1} parent=35 // pred_fallthru
          _
        %p356 = scmp.lt.s32.totalorder %s24, 1
        %s357 = scalar_select %p356, %s24, 1
        %s358 = smul.addr %s357, 4
        %s359 = scalar_lea.vmem %s4, %s358
        %p360 = scmp.lt.s32.totalorder %s24, 1
        %s361 = scalar_select %p360, %s24, 1
        %s362 = smul.addr %s361, 4
        %s363 = scalar_lea.vmem %s5, %s362
        // Predicated region
        $region49: #{tpu_custom_call.1} parent=35 // pred_check
          %p364 = pneg %p141
        $region50: #{tpu_custom_call.1} parent=35 // pred_check_branch
          %366 = sbr.rel (%p364) target = $region52
        $region51: #{tpu_custom_call.1} parent=35 // pred_region
          _
        $region52: #{tpu_custom_call.1} parent=35 // pred_fallthru
          _
        // Predicated region
        $region53: #{tpu_custom_call.1} parent=35 // pred_check
          %p367 = pneg %p167
        $region54: #{tpu_custom_call.1} parent=35 // pred_check_branch
          %369 = sbr.rel (%p367) target = $region56
        $region55: #{tpu_custom_call.1} parent=35 // pred_region
          _
        $region56: #{tpu_custom_call.1} parent=35 // pred_fallthru
          _
      $region36: #{tpu_custom_call.1} parent=5 // pred_fallthru
        _
      %p370 = scmp.le.s32.totalorder 2, %s15
      // Predicated region
      $region57: #{tpu_custom_call.1} parent=5 // pred_check
        %p371 = pneg %p370
      $region58: #{tpu_custom_call.1} parent=5 // pred_check_branch
        %373 = sbr.rel (%p371) target = $region60
      $region59: #{tpu_custom_call.1} parent=5 // pred_region
        %s374 = ssub.s32 %s15, 2
        // Predicated region
        $region61: #{tpu_custom_call.1} parent=59 // pred_check
          %p375 = pneg %p147
        $region62: #{tpu_custom_call.1} parent=59 // pred_check_branch
          %377 = sbr.rel (%p375) target = $region64
        $region63: #{tpu_custom_call.1} parent=59 // pred_region
          %p378 = scmp.lt.s32.totalorder %s26, 1
          %s379 = scalar_select %p378, %s26, 1
          %s380 = smul.addr %s379, 4
          %s381 = scalar_lea.vmem %s4, %s380
        $region64: #{tpu_custom_call.1} parent=59 // pred_fallthru
          _
        // Predicated region
        $region65: #{tpu_custom_call.1} parent=59 // pred_check
          %p382 = pneg %p173
        $region66: #{tpu_custom_call.1} parent=59 // pred_check_branch
          %384 = sbr.rel (%p382) target = $region68
        $region67: #{tpu_custom_call.1} parent=59 // pred_region
          %p385 = scmp.lt.s32.totalorder %s26, 1
          %s386 = scalar_select %p385, %s26, 1
          %s387 = smul.addr %s386, 4
          %s388 = scalar_lea.vmem %s5, %s387
        $region68: #{tpu_custom_call.1} parent=59 // pred_fallthru
          _
      $region60: #{tpu_custom_call.1} parent=5 // pred_fallthru
        _
    $region6: #{tpu_custom_call.1} parent=1 // loop_footer
      %s19 = sadd.s32 1, %s15
    $region7: #{tpu_custom_call.1} parent=1 // loop_footer_branch
      %14 = sbr.rel target = $region3
    $region8: #{tpu_custom_call.1} parent=1 // loop_exit
      _
    %389 = vsyncpa [#allocation5], 1
    %s390 = scalar_lea.sflag [#allocation5], 1
    %391 = vsyncpa %s390, 1

</llo_original>
